<compile_context>
chip_gen: v7x
topology: tpu7x:2x2x1
jax: 0.10.0
libtpu: 0.0.40
codegen_flags: <defaults>
</compile_context>

<pallas_src>
import functools

import jax
import jax.numpy as jnp
from jax import lax
from jax.experimental import pallas as pl
from jax.experimental.pallas import tpu as pltpu


def _round_up(x, m):
    return ((x + m - 1) // m) * m


def _vmem_budgets():
    """(working-set budget, compiler vmem limit) in bytes, per generation."""
    cap = 64 * 1024 * 1024                      # conservative fallback (v7x/TC)
    try:
        info = pltpu.get_tpu_info()
        c = int(getattr(info, "vmem_capacity_bytes", 0) or 0)
        if c >= 32 * 1024 * 1024:
            cap = c
    except Exception:
        pass
    limit = (cap * 7) // 8                                    # 112 / 56 MiB
    budget = min(limit - 12 * 1024 * 1024, (cap * 3) // 4)    # 96 / 44 MiB
    budget = max(budget, 16 * 1024 * 1024)
    return budget, limit


def _per_elem_bytes(itemsize):
    # 2 double-buffered I/O arrays (in + out) at the input dtype, plus the
    # in-kernel f32 temporaries (upcast of x and the materialized exp block).
    return 4 * itemsize + 8


def _min_steps_for(total_bytes):
    if total_bytes >= 4 * 1024 * 1024:
        return 4            # pipelining + balanced v7x two-TC split
    if total_bytes >= 1 * 1024 * 1024:
        return 2
    return 1


# ----------------------------- kernels --------------------------------------

def _softmax_axis0_kernel(x_ref, o_ref, *, approx_recip):
    # The full leading (reduction) axis is resident in the block.
    # NOTE: no max-stabilization, on purpose (faithful to the module).
    x = x_ref[...].astype(jnp.float32)
    e = jnp.exp(x)                                    # EUP transcendental
    denom = jnp.sum(e, axis=0, keepdims=True)         # per-column sum, axis 0
    inv = pl.reciprocal(denom, approx=approx_recip)
    o_ref[...] = (e * inv).astype(o_ref.dtype)        # multiplies, no divides


def _denom_kernel(x_ref, d_ref, *, n_total, tile_n, need_mask):
    # Pass 1 of the large-N path: accumulate sum(exp(x), axis=0) per column.
    i = pl.program_id(1)                              # N (reduction) grid axis

    @pl.when(i == 0)
    def _():
        d_ref[...] = jnp.zeros_like(d_ref)

    e = jnp.exp(x_ref[...].astype(jnp.float32))
    if need_mask:
        # Mask rows past the true N in the (garbage-filled) partial last block
        # so they cannot contaminate the per-column sums.
        row = lax.broadcasted_iota(jnp.int32, e.shape, 0) + i * tile_n
        e = jnp.where(row < n_total, e, 0.0)
    d_ref[...] += jnp.sum(e, axis=0, keepdims=True)


def _scale_kernel(x_ref, d_ref, o_ref, *, approx_recip):
    # Pass 2 of the large-N path: recompute exp (EUP has slack; avoids
    # materializing an extra N*D f32 intermediate in HBM) and rescale.
    e = jnp.exp(x_ref[...].astype(jnp.float32))
    inv = pl.reciprocal(d_ref[...], approx=approx_recip)
    o_ref[...] = (e * inv).astype(o_ref.dtype)


# --------------------------- tile choosers ----------------------------------

def _choose_row_tile(n, d128, itemsize, budget, min_steps):
    """Middle-axis tile for the packed (N, D//128, 128) layout."""
    sub = {1: 32, 2: 16, 4: 8}.get(itemsize, 8)       # native sublane packing
    unit = n * 128 * _per_elem_bytes(itemsize)        # bytes per middle "row"
    max_rows = max(1, budget // unit)
    quantum = sub if max_rows >= sub else 8           # 8 is the hard constraint
    steps = max(min_steps, pl.cdiv(d128, max_rows))
    tile = pl.cdiv(d128, steps)
    if tile >= d128:
        return d128                                   # full dim: always legal
    tile = max(quantum, (tile // quantum) * quantum)  # round DOWN (budget-safe)
    return min(tile, d128)


def _choose_lane_tile(n, d, itemsize, budget, min_steps):
    """Lane-axis tile (multiple of 128) for the 2-D (N, D) layout."""
    unit = n * 128 * _per_elem_bytes(itemsize)        # bytes per 128-lane group
    max_units = max(1, budget // unit)
    d_units = pl.cdiv(d, 128)
    steps = max(min_steps, pl.cdiv(d_units, max_units))
    tile_units = max(1, min(pl.cdiv(d_units, steps), max_units))
    return tile_units * 128


# ---------------------------- large-N path ----------------------------------

def _softmax_two_pass(x2d, budget, limit, approx_recip, tile_n=None, tile_d=None):
    n, d = x2d.shape
    itemsize = jnp.dtype(x2d.dtype).itemsize
    per_elem = _per_elem_bytes(itemsize)
    d_pad = _round_up(d, 128)

    if tile_d is None:
        tile_d = min(d_pad, 4096)
        # Keep >= 2 column tiles when possible so the denominator pass's
        # 'parallel' axis can be split across TensorCores (v7x).
        if d_pad >= 256 and pl.cdiv(d_pad, tile_d) < 2:
            tile_d = _round_up(pl.cdiv(d_pad, 2), 128)
    if tile_n is None:
        max_rows = max(8, ((budget // (tile_d * per_elem)) // 8) * 8)
        if n <= max_rows:
            tile_n = n
        else:
            steps = max(4, pl.cdiv(n, max_rows))      # balanced, >= 4 steps
            tile_n = max(8, (pl.cdiv(n, steps) // 8) * 8)

    n_steps = pl.cdiv(n, tile_n)
    d_steps = pl.cdiv(d, tile_d)
    need_mask = (n % tile_n) != 0

    denom = pl.pallas_call(
        functools.partial(_denom_kernel, n_total=n, tile_n=tile_n,
                          need_mask=need_mask),
        out_shape=jax.ShapeDtypeStruct((1, d), jnp.float32),
        grid_spec=pltpu.PrefetchScalarGridSpec(
            num_scalar_prefetch=0,
            grid=(d_steps, n_steps),                   # reduction axis last
            in_specs=[pl.BlockSpec((tile_n, tile_d), lambda j, i: (i, j))],
            out_specs=pl.BlockSpec((1, tile_d), lambda j, i: (0, j)),
        ),
        compiler_params=pltpu.CompilerParams(
            dimension_semantics=("parallel", "arbitrary"),
            vmem_limit_bytes=limit),
        cost_estimate=pl.CostEstimate(
            flops=n * d, transcendentals=n * d,
            bytes_accessed=n * d * itemsize + 4 * d),
    )(x2d)

    out2d = pl.pallas_call(
        functools.partial(_scale_kernel, approx_recip=approx_recip),
        out_shape=jax.ShapeDtypeStruct((n, d), x2d.dtype),
        grid_spec=pltpu.PrefetchScalarGridSpec(
            num_scalar_prefetch=0,
            grid=(d_steps, n_steps),
            in_specs=[pl.BlockSpec((tile_n, tile_d), lambda j, i: (i, j)),
                      pl.BlockSpec((1, tile_d), lambda j, i: (0, j))],
            out_specs=pl.BlockSpec((tile_n, tile_d), lambda j, i: (i, j)),
        ),
        compiler_params=pltpu.CompilerParams(
            dimension_semantics=("parallel", "parallel"),
            vmem_limit_bytes=limit),
        cost_estimate=pl.CostEstimate(
            flops=2 * n * d, transcendentals=n * d,
            bytes_accessed=2 * n * d * itemsize + 4 * d),
    )(x2d, denom)
    return out2d


# ------------------------------ wrapper --------------------------------------

def softmax_module_forward(x, *, force_two_pass=False, _two_pass_tiles=None):
    """Faithful port of Softmax.forward: exp(x) / exp(x).sum(axis=0)."""
    orig_shape = x.shape
    orig_dtype = x.dtype
    n = orig_shape[0]
    d = 1
    for s in orig_shape[1:]:
        d *= s
    itemsize = jnp.dtype(orig_dtype).itemsize
    approx_recip = itemsize < 4                        # EUP recip for 16-bit outs
    budget, limit = _vmem_budgets()
    total_bytes = n * d * itemsize
    min_steps = _min_steps_for(total_bytes)

    # Is a single-pass, full-N-resident tiling viable with decent block sizes
    # (>= 1024 lanes per full-N strip within the temp-aware VMEM budget)?
    unit_bytes = n * 128 * _per_elem_bytes(itemsize)
    max_units = budget // max(unit_bytes, 1)
    d_units = pl.cdiv(max(d, 1), 128)
    single_pass_ok = (max_units >= d_units) or (max_units >= 8)

    if force_two_pass or not single_pass_ok:
        tn, td = (None, None) if _two_pass_tiles is None else _two_pass_tiles
        out2d = _softmax_two_pass(x.reshape(n, d), budget, limit, approx_recip,
                                  tile_n=tn, tile_d=td)
        return out2d.reshape(orig_shape)

    kernel = functools.partial(_softmax_axis0_kernel, approx_recip=approx_recip)
    cost = pl.CostEstimate(flops=3 * n * d, transcendentals=n * d,
                           bytes_accessed=2 * n * d * itemsize)
    compiler_params = pltpu.CompilerParams(
        dimension_semantics=("parallel",), vmem_limit_bytes=limit)

    if d % 128 == 0:
        # Sublane-packed layout: (N, D//128, 128).  vregs are fully packed
        # even for tiny N and the axis-0 reduction is elementwise (no XLU).
        d128 = d // 128
        tile_s = _choose_row_tile(n, d128, itemsize, budget, min_steps)
        x3d = x.reshape(n, d128, 128)
        out3d = pl.pallas_call(
            kernel,
            out_shape=jax.ShapeDtypeStruct((n, d128, 128), orig_dtype),
            grid_spec=pltpu.PrefetchScalarGridSpec(
                num_scalar_prefetch=0,
                grid=(pl.cdiv(d128, tile_s),),
                in_specs=[pl.BlockSpec((n, tile_s, 128), lambda j: (0, j, 0))],
                out_specs=pl.BlockSpec((n, tile_s, 128), lambda j: (0, j, 0)),
            ),
            compiler_params=compiler_params,
            cost_estimate=cost,
        )(x3d)
        return out3d.reshape(orig_shape)

    # Fallback: 2-D (N, D) layout tiled along the lane axis.  No jnp.pad /
    # slice round-trip: the cdiv grid masks the partial last block.  OOB lanes
    # of that block may hold garbage that exp() turns into inf/NaN, but stores
    # are masked and columns are independent along axis 0, so valid columns
    # are never contaminated.  (Do not "fix" by padding.)
    tile_d = _choose_lane_tile(n, d, itemsize, budget, min_steps)
    x2d = x.reshape(n, d)
    out2d = pl.pallas_call(
        kernel,
        out_shape=jax.ShapeDtypeStruct((n, d), orig_dtype),
        grid_spec=pltpu.PrefetchScalarGridSpec(
            num_scalar_prefetch=0,
            grid=(pl.cdiv(d, tile_d),),
            in_specs=[pl.BlockSpec((n, tile_d), lambda j: (0, j))],
            out_specs=pl.BlockSpec((n, tile_d), lambda j: (0, j)),
        ),
        compiler_params=compiler_params,
        cost_estimate=cost,
    )(x2d)
    return out2d.reshape(orig_shape)


def _reference(x):
    e = jnp.exp(x.astype(jnp.float32))
    return (e / jnp.sum(e, axis=0, keepdims=True)).astype(x.dtype)


if __name__ == "__main__":
    key, k1, k2 = jax.random.split(jax.random.PRNGKey(0), 3)

    # Small NCHW input consistent with the module's forward pass
    # (packed single-pass path: D = 4*16*16 = 1024 is a multiple of 128).
    x = jax.random.normal(key, (2, 4, 16, 16), dtype=jnp.float32)
    out = jax.block_until_ready(softmax_module_forward(x))
    assert out.shape == x.shape and out.dtype == x.dtype
    assert jnp.allclose(out, _reference(x), atol=1e-5, rtol=1e-5)

    # Exercise the 2-D fallback path (D = 50 not a multiple of 128).
    x2 = jax.random.normal(k1, (4, 5, 10), dtype=jnp.float32)
    o2 = jax.block_until_ready(softmax_module_forward(x2))
    assert jnp.allclose(o2, _reference(x2), atol=1e-5, rtol=1e-5)

    # Exercise the large-N two-pass path (forced, with small tiles so the
    # masked partial-N reduction block is covered: 20 % 8 != 0, 150 % 128 != 0).
    x3 = jax.random.normal(k2, (20, 3, 50), dtype=jnp.float32)
    o3 = jax.block_until_ready(
        softmax_module_forward(x3, force_two_pass=True, _two_pass_tiles=(8, 128)))
    assert jnp.allclose(o3, _reference(x3), atol=1e-5, rtol=1e-5)

    print("KERNEL_OK")
</pallas_src>

<mosaic_0001>
module attributes {stable_mosaic.version = 11 : i64} {
  func.func @_softmax_axis0_kernel(%arg0: i32, %arg1: memref<2x8x128xf32, #tpu.memory_space<vmem>>, %arg2: memref<2x8x128xf32, #tpu.memory_space<vmem>>) attributes {dimension_semantics = [#tpu.dimension_semantics<parallel>], iteration_bounds = array<i64: 1>, scalar_prefetch = 0 : i64, scratch_operands = 0 : i64, tpu.core_type = #tpu.core_type<tc>, window_params = [{transform_indices = @transform_0, window_bounds = array<i64: 2, 8, 128>}, {transform_indices = @transform_1, window_bounds = array<i64: 2, 8, 128>}]} {
    %c0 = arith.constant 0 : index
    %c0_0 = arith.constant 0 : index
    %c0_1 = arith.constant 0 : index
    %0 = vector.load %arg1[%c0, %c0_0, %c0_1] : memref<2x8x128xf32, #tpu.memory_space<vmem>>, vector<2x8x128xf32>
    %1 = math.exp %0 : vector<2x8x128xf32>
    %cst = arith.constant dense<0.000000e+00> : vector<8x128xf32>
    %2 = vector.multi_reduction <add>, %1, %cst [0] : vector<2x8x128xf32> to vector<8x128xf32>
    %3 = vector.shape_cast %2 : vector<8x128xf32> to vector<1x8x128xf32>
    %4 = tpu.reciprocal %3 : vector<1x8x128xf32> -> vector<1x8x128xf32>
    %5 = vector.broadcast %4 : vector<1x8x128xf32> to vector<2x8x128xf32>
    %6 = arith.mulf %1, %5 : vector<2x8x128xf32>
    %c0_2 = arith.constant 0 : index
    %c0_3 = arith.constant 0 : index
    %c0_4 = arith.constant 0 : index
    %7 = vector.load %arg2[%c0_2, %c0_3, %c0_4] : memref<2x8x128xf32, #tpu.memory_space<vmem>>, vector<2x8x128xf32>
    tpu.vector_store %arg2[%c0_2, %c0_3, %c0_4], %6 {strides = array<i32>} : memref<2x8x128xf32, #tpu.memory_space<vmem>>, vector<2x8x128xf32>,
    return
  }
  func.func @transform_0(%arg0: i32) -> (i32, i32, i32) {
    %c0_i32 = arith.constant 0 : i32
    %c0_i32_0 = arith.constant 0 : i32
    %c0_i32_1 = arith.constant 0 : i32
    return %c0_i32, %arg0, %c0_i32_0 : i32, i32, i32
  }
  func.func @transform_1(%arg0: i32) -> (i32, i32, i32) {
    %c0_i32 = arith.constant 0 : i32
    %c0_i32_0 = arith.constant 0 : i32
    %c0_i32_1 = arith.constant 0 : i32
    return %c0_i32, %arg0, %c0_i32_0 : i32, i32, i32
  }
}

</mosaic_0001>

<llo_original>
// kernel: tpu_custom_call.1
$region0: #{tpu_custom_call.1}
  #allocation0 [shape = 'u32[]', space=smem, size = 0x4, offset = 0x4, fixed_abs, tag = 'smem constant byte address 0x4 - core index']
  #allocation1 [shape = 'u32[144,128]{1,0:T(1,128)}', space=vmem, size = 0x12000, scoped, tag = 'internal scratch']
  %s0 = inlined_call_operand.hbm [shape: f32[2,8,128], index: 0, kind: input, shape index: {}]
  %s1 = inlined_call_operand.hbm [shape: f32[2,8,128], index: 1, kind: output, shape index: {}]
  %s2 = sld [smem:[#allocation0]]
  $region18: #{tpu_custom_call.1} parent=0
    _
  %s4 = ssub.s32 1, %s2
  %s5 = scalar_select 0, %s4, %s2
  $region1: #{tpu_custom_call.1} parent=0
    #allocation2 [shape = 'u8[8192]{0}', space=vmem, size = 0x2000, scoped, tag = 'input window, operand 0, single buffered']
    #allocation3 [shape = 's32[1]{0}', space=sflag, size = 0x4, scoped, tag = 'scoped memory for tpu_custom_call.1']
    #allocation4 [shape = 's32[1]{0}', space=sflag, size = 0x4, scoped, tag = 'scoped memory for tpu_custom_call.1']
    #allocation5 [shape = 'u8[8192]{0}', space=vmem, size = 0x2000, scoped, tag = 'output window, operand 0, single buffered']
    %6 = vsyncpa [#allocation3], 0
    %7 = vsyncpa [#allocation4], 0
    // Predicated region
    $region2: #{tpu_custom_call.1} parent=1 // pred_check
      _
    $region3: #{tpu_custom_call.1} parent=1 // pred_check_branch
      %9 = sbr.rel (0) target = $region5
    $region4: #{tpu_custom_call.1} parent=1 // pred_region
      %s11 = ssub.s32 256, 256
      %12 = vsyncadd [#allocation3], %s11
      %s13 = sshll.u32 [#allocation2], 4
      %s14 = int_to_ptr.vmem [resolvable:$true] %s13
      %19 = dma.hbm_to_vmem [thread:$0]  %s0, 256, %s14, [#allocation3], 128, 128, 8
    $region5: #{tpu_custom_call.1} parent=1 // pred_fallthru
      _
    // Predicated region
    $region6: #{tpu_custom_call.1} parent=1 // pred_check
      _
    $region7: #{tpu_custom_call.1} parent=1 // pred_check_branch
      %21 = sbr.rel (0) target = $region9
    $region8: #{tpu_custom_call.1} parent=1 // pred_region
      %22 = dma.done [#allocation3], 256
    $region9: #{tpu_custom_call.1} parent=1 // pred_fallthru
      _
    %v23 = vld [vmem:[#allocation2] sm:$0xff]
    %v24 = vld [vmem:[#allocation2 + $0x8] sm:$0xff]
    %v25 = vmul.f32 %v23, 1.442695
    %v26 = vpow.pop %v25
    %v27 = vmul.f32 %v24, 1.442695
    %v28 = vpow.pop %v27
    %v29 = vadd.f32 %v26, %v28
    %v30 = vrcp.pop %v29
    %v31 = vmul.f32 %v26, %v30
    %v32 = vmul.f32 %v28, %v30
    %33 = vst [vmem:[#allocation5] sm:$0xff] %v31
    %34 = vst [vmem:[#allocation5 + $0x8] sm:$0xff] %v32
    // Predicated region
    $region10: #{tpu_custom_call.1} parent=1 // pred_check
      _
    $region11: #{tpu_custom_call.1} parent=1 // pred_check_branch
      %36 = sbr.rel (0) target = $region13
    $region12: #{tpu_custom_call.1} parent=1 // pred_region
      %s38 = ssub.s32 256, 256
      %39 = vsyncadd [#allocation4], %s38
      %s40 = sshll.u32 [#allocation5], 4
      %s41 = int_to_ptr.vmem [resolvable:$true] %s40
      %46 = dma.vmem_to_hbm [thread:$0]  %s41, 256, %s1, [#allocation4], 128, 128, 8
    $region13: #{tpu_custom_call.1} parent=1 // pred_fallthru
      _
    // Predicated region
    $region14: #{tpu_custom_call.1} parent=1 // pred_check
      _
    $region15: #{tpu_custom_call.1} parent=1 // pred_check_branch
      %48 = sbr.rel (0) target = $region17
    $region16: #{tpu_custom_call.1} parent=1 // pred_region
      %49 = dma.done [#allocation4], 256
    $region17: #{tpu_custom_call.1} parent=1 // pred_fallthru
      _
    %50 = vsyncpa [#allocation3], 1
    %51 = vsyncpa [#allocation4], 1

</llo_original>
